<compile_context>
chip_gen: v7x
topology: tpu7x:2x2x1
jax: 0.10.0
libtpu: 0.0.40
codegen_flags: <defaults>
</compile_context>

<pallas_src>
import jax
import jax.numpy as jnp
from jax.experimental import pallas as pl
from jax.experimental.pallas import tpu as pltpu

_LP = 128  # lane padding for one-hot slabs / tables


def _elu_plus_one(x):
    # elu(x, alpha=1) + 1 == exp(min(x,0)) + max(x,0)  (2 fewer VALU ops/elem).
    return jnp.exp(jnp.minimum(x, 0.0)) + jnp.maximum(x, 0.0)


def _attn_kernel(idx_ref, q_ref, ktab_ref, bk_ref, qtab_ref, out_ref):
    """One batch block per grid step.

    idx_ref  : [bb, slp, 2] int32  (channel 0: value idx in [0,nv) or -1 pad,
                                    channel 1: key idx + nv  in [nv,nv+vocab) or -1 pad)
    q_ref    : [bb, 1]      int32  query token id in [0, vocab)
    ktab_ref : [128, d]     f32    fused K table (value rows + key-embedding rows)
    bk_ref   : [1, d]       f32
    qtab_ref : [128, d]     f32    pre-activated Q table (row = elu(embK@Wq^T+bq)+1)
    out_ref  : [bb, 128]    f32    lane-dense padded output (values in lanes [0,nv))
    """
    bb, slp, _ = idx_ref.shape
    lp, d = ktab_ref.shape

    idx = idx_ref[...]                                   # [bb, slp, 2]
    val = idx[:, :, 0:1]                                 # [bb, slp, 1]
    key = idx[:, :, 1:2]                                 # [bb, slp, 1]

    # Combined 0/1 slab: exactly two ones per non-pad row (value lane + key
    # lane; padded rows with idx == -1 are all-zero and drop out everywhere).
    lane = jax.lax.broadcasted_iota(jnp.int32, (bb, slp, lp), 2)
    packed = jnp.logical_or(lane == val, lane == key).astype(jnp.float32)

    # K = elu([v_onehot, k_emb] @ W_k^T + b_k) + 1 as ONE lane-dense matmul:
    # packed @ fused_table selects W_kv^T[val] + (embK @ W_ke^T)[key] exactly.
    k_lin = jnp.dot(packed.reshape(bb * slp, lp), ktab_ref[...],
                    preferred_element_type=jnp.float32) + bk_ref[...]
    K = _elu_plus_one(k_lin).reshape(bb, slp, d)          # [bb, slp, d]

    # Q: exact row gather from the pre-activated table via one-hot matmul.
    lane_q = jax.lax.broadcasted_iota(jnp.int32, (bb, lp), 1)
    oh_q = (lane_q == q_ref[...]).astype(jnp.float32)     # [bb, 128]
    Q = jnp.dot(oh_q, qtab_ref[...],
                preferred_element_type=jnp.float32)       # [bb, d]

    # Scores s[b,l] = <K[b,l], Q[b]>; masked segment sums over the slab.
    #   num[b,v]  = sum_l 1[val==v] * s[b,l]          (== (V^T K) Q)
    #   den[b]    = sum_l s[b,l] + eps                (== <sum_l K, Q> + eps)
    # Each non-pad packed row sums to 2 over lanes, so sum_lanes(num) = 2*den.
    s = jnp.sum(K * Q[:, None, :], axis=-1, keepdims=True)   # [bb, slp, 1]
    num = jnp.sum(packed * s, axis=1)                         # [bb, 128]
    den = 0.5 * jnp.sum(num, axis=-1, keepdims=True) + 1e-6   # [bb, 1]

    # EUP approx reciprocal + one Newton step (float32-level accuracy).
    inv = pl.reciprocal(den, approx=True)
    inv = inv * (2.0 - den * inv)
    out_ref[...] = num * inv


def _pick_batch_block(bs_pad, slp, d, budget_bytes=12 * 1024 * 1024):
    """Largest multiple-of-8 batch block dividing bs_pad that fits the VMEM
    budget (packed slab + K + double-buffered index/output tiles)."""
    per_row = 4 * (slp * (_LP + 2 * d + 8) + 2 * _LP + 2 * 2 * slp)
    cap = max(8, (budget_bytes // per_row) // 8 * 8)
    bb = min(bs_pad, cap)
    while bs_pad % bb:
        bb -= 8
    bb = max(bb, 8)
    # Keep >= 2 grid steps when the batch allows it: on v7x the parallel batch
    # axis then shards across both TensorCores; on v5e/v6e the extra step only
    # costs ~0.35 us.
    if bb == bs_pad and bs_pad >= 16 and (bs_pad // 2) % 8 == 0:
        bb = bs_pad // 2
    return bb


def init_params(key, *, embedding_size, hidden_size, n_values, n_keys):
    e, d = embedding_size, hidden_size
    vocab = n_values + n_keys
    in_k = e + n_values
    ks = jax.random.split(key, 5)

    emb_k = jax.random.normal(ks[0], (vocab, e), jnp.float32)          # N(0,1)
    u = 1.0 / (d ** 0.5)
    w_k = jax.random.uniform(ks[1], (d, in_k), jnp.float32, -u, u)     # W_k.weight
    w_q = jax.random.uniform(ks[2], (d, e), jnp.float32, -u, u)        # W_q.weight
    ub_k = 1.0 / (in_k ** 0.5)
    b_k = jax.random.uniform(ks[3], (d,), jnp.float32, -ub_k, ub_k)    # nn.Linear default bias
    ub_q = 1.0 / (e ** 0.5)
    b_q = jax.random.uniform(ks[4], (d,), jnp.float32, -ub_q, ub_q)

    # TODO(synk): large-vocab path (scalar-prefetch / DMA row gather) not
    # implemented; this fused-table path requires n_values + vocab <= 128.
    assert n_values + vocab <= _LP and n_values <= _LP

    # Fused lane-dense K table:
    #   rows [0, nv)            : value-one-hot columns of W_k (transposed)
    #   rows [nv, nv + vocab)   : embeddingK @ W_k_emb^T  (key-embedding part)
    wkv_t = w_k[:, :n_values].T                                        # [nv, d]
    ke_table = emb_k @ w_k[:, n_values:].T                             # [vocab, d]
    k_table = jnp.zeros((_LP, d), jnp.float32)
    k_table = k_table.at[:n_values].set(wkv_t)
    k_table = k_table.at[n_values:n_values + vocab].set(ke_table)

    # Pre-activated query table; selecting a single row via one-hot matmul is
    # exact, so the elu can be folded in here.
    q_act = jax.nn.elu(emb_k @ w_q.T + b_q) + 1.0                      # [vocab, d]
    q_table = jnp.zeros((_LP, d), jnp.float32).at[:vocab].set(q_act)

    # NOTE: W_v, W_f, W_b and embeddingV exist in the torch module but do not
    # influence the 'linear' + 'sum' forward path, so they are not materialized.
    return {
        "embeddingK": emb_k,
        "W_k_T": w_k.T, "b_k": b_k.reshape(1, d),
        "W_q_T": w_q.T, "b_q": b_q.reshape(1, d),
        "k_table": k_table, "q_table": q_table,
        "n_values": n_values, "vocab": vocab,
    }


def prefix_sum_linear_attention(params, x_idx, q_idx):
    """x_idx: int32 [bs, 2, sl]; q_idx: int32 [bs, 1] -> f32 [bs, n_values]."""
    nv = params["n_values"]
    ktab, qtab, bk = params["k_table"], params["q_table"], params["b_k"]
    lp, d = ktab.shape

    bs, _, sl = x_idx.shape

    # Pad sequence length to a multiple of 8 with sentinel -1 (all-zero one-hot
    # row -> contributes nothing to num/den), keeping in-kernel reshapes free.
    slp = ((sl + 7) // 8) * 8
    # NOTE: indices outside their valid ranges are silently dropped here,
    # whereas torch's one_hot/embedding would raise.
    val = (x_idx[:, 1, :] - nv).astype(jnp.int32)
    key = (x_idx[:, 0, :] + nv).astype(jnp.int32)
    if slp != sl:
        pad = ((0, 0), (0, slp - sl))
        val = jnp.pad(val, pad, constant_values=-1)
        key = jnp.pad(key, pad, constant_values=-1)
    idx = jnp.stack([val, key], axis=-1)                      # [bs, slp, 2]

    # Pad batch to a multiple of 8 for (8,128)-dense blocks / unmasked stores.
    bs_pad = ((bs + 7) // 8) * 8
    q2 = q_idx.astype(jnp.int32)
    if bs_pad != bs:
        idx = jnp.pad(idx, ((0, bs_pad - bs), (0, 0), (0, 0)), constant_values=-1)
        q2 = jnp.pad(q2, ((0, bs_pad - bs), (0, 0)), constant_values=0)

    bb = _pick_batch_block(bs_pad, slp, d)
    grid = (bs_pad // bb,)

    flops = 2 * bs_pad * slp * lp * d + 2 * bs_pad * lp * d + 4 * bs_pad * slp * d
    bytes_accessed = int(idx.size * 4 + q2.size * 4 + (2 * lp * d + d) * 4
                         + bs_pad * lp * 4)

    out = pl.pallas_call(
        _attn_kernel,
        out_shape=jax.ShapeDtypeStruct((bs_pad, lp), jnp.float32),
        grid=grid,
        in_specs=[
            pl.BlockSpec((bb, slp, 2), lambda b: (b, 0, 0)),   # packed indices
            pl.BlockSpec((bb, 1), lambda b: (b, 0)),           # query token id
            pl.BlockSpec((lp, d), lambda b: (0, 0)),           # fused K table
            pl.BlockSpec((1, d), lambda b: (0, 0)),            # b_k
            pl.BlockSpec((lp, d), lambda b: (0, 0)),           # pre-activated Q table
        ],
        out_specs=pl.BlockSpec((bb, lp), lambda b: (b, 0)),
        compiler_params=pltpu.CompilerParams(
            dimension_semantics=("parallel",),
            vmem_limit_bytes=32 * 1024 * 1024),
        cost_estimate=pl.CostEstimate(flops=int(flops),
                                      transcendentals=int(bs_pad * slp * d),
                                      bytes_accessed=bytes_accessed),
    )(idx, q2, ktab, bk, qtab)
    return out[:bs, :nv]


def _reference(params, x_idx, q_idx):
    """Pure-JAX reference mirroring the torch forward ('linear' + 'sum')."""
    n_values = params["n_values"]
    emb_k = params["embeddingK"]
    key_idx = x_idx[:, 0, :]
    val_idx = x_idx[:, 1, :] - n_values
    v_emb = jax.nn.one_hot(val_idx, n_values, dtype=jnp.float32)
    k_emb = emb_k[key_idx]
    xcat = jnp.concatenate([v_emb, k_emb], axis=-1)
    qemb = emb_k[q_idx]

    K = jax.nn.elu(xcat @ params["W_k_T"] + params["b_k"]) + 1.0
    Q = jax.nn.elu(qemb @ params["W_q_T"] + params["b_q"]) + 1.0
    V = v_emb
    VK = jnp.einsum("blv,blk->bvk", V, K)
    Z = K.sum(axis=1)
    num = jnp.einsum("bvp,blp->blv", VK, Q)
    den = jnp.einsum("bp,blp->bl", Z, Q)[..., None] + 1e-6
    return (num / den)[:, 0, :]


if __name__ == "__main__":
    embedding_size = 8
    hidden_size = 32
    n_values = 4
    n_keys = 4
    bs, sl = 2, 8
    vocab = n_values + n_keys

    root = jax.random.PRNGKey(0)
    k_param, k_key, k_val, k_q = jax.random.split(root, 4)

    params = init_params(k_param, embedding_size=embedding_size,
                         hidden_size=hidden_size, n_values=n_values,
                         n_keys=n_keys)

    key_indices = jax.random.randint(k_key, (bs, 1, sl), 0, vocab, jnp.int32)
    value_indices = jax.random.randint(k_val, (bs, 1, sl), n_values,
                                       2 * n_values, jnp.int32)
    x = jnp.concatenate([key_indices, value_indices], axis=1)   # [bs, 2, sl]
    q = jax.random.randint(k_q, (bs, 1), 0, vocab, jnp.int32)   # [bs, 1]

    y = prefix_sum_linear_attention(params, x, q)
    y = jax.block_until_ready(y)

    y_ref = _reference(params, x, q)
    assert y.shape == (bs, n_values)
    assert jnp.allclose(y, y_ref, atol=1e-5, rtol=1e-5), \
        float(jnp.max(jnp.abs(y - y_ref)))

    print("KERNEL_OK")
</pallas_src>

<mosaic_0001>
module attributes {stable_mosaic.version = 11 : i64} {
  func.func @_attn_kernel(%arg0: i32, %arg1: memref<8x8x2xi32, #tpu.memory_space<vmem>>, %arg2: memref<8x1xi32, #tpu.memory_space<vmem>>, %arg3: memref<128x32xf32, #tpu.memory_space<vmem>>, %arg4: memref<1x32xf32, #tpu.memory_space<vmem>>, %arg5: memref<128x32xf32, #tpu.memory_space<vmem>>, %arg6: memref<8x128xf32, #tpu.memory_space<vmem>>) attributes {dimension_semantics = [#tpu.dimension_semantics<parallel>], iteration_bounds = array<i64: 1>, scalar_prefetch = 0 : i64, scratch_operands = 0 : i64, tpu.core_type = #tpu.core_type<tc>, window_params = [{transform_indices = @transform_0, window_bounds = array<i64: 8, 8, 2>}, {transform_indices = @transform_1, window_bounds = array<i64: 8, 1>}, {pipeline_mode = #tpu.pipeline_mode<synchronous>, transform_indices = @transform_2, window_bounds = array<i64: 128, 32>}, {pipeline_mode = #tpu.pipeline_mode<synchronous>, transform_indices = @transform_3, window_bounds = array<i64: 1, 32>}, {pipeline_mode = #tpu.pipeline_mode<synchronous>, transform_indices = @transform_4, window_bounds = array<i64: 128, 32>}, {transform_indices = @transform_5, window_bounds = array<i64: 8, 128>}]} {
    %c0 = arith.constant 0 : index
    %c0_0 = arith.constant 0 : index
    %c0_1 = arith.constant 0 : index
    %0 = vector.load %arg1[%c0, %c0_0, %c0_1] : memref<8x8x2xi32, #tpu.memory_space<vmem>>, vector<8x8x2xi32>
    %1 = vector.extract_strided_slice %0 {offsets = [0, 0, 0], sizes = [8, 8, 1], strides = [1, 1, 1]} : vector<8x8x2xi32> to vector<8x8x1xi32>
    %2 = vector.extract_strided_slice %0 {offsets = [0, 0, 1], sizes = [8, 8, 1], strides = [1, 1, 1]} : vector<8x8x2xi32> to vector<8x8x1xi32>
    %3 = tpu.iota {dimensions = array<i32: 2>} : vector<8x8x128xi32>
    %4 = vector.broadcast %1 : vector<8x8x1xi32> to vector<8x8x128xi32>
    %5 = arith.cmpi eq, %3, %4 : vector<8x8x128xi32>
    %6 = vector.broadcast %2 : vector<8x8x1xi32> to vector<8x8x128xi32>
    %7 = arith.cmpi eq, %3, %6 : vector<8x8x128xi32>
    %8 = arith.ori %5, %7 : vector<8x8x128xi1>
    %9 = arith.extui %8 : vector<8x8x128xi1> to vector<8x8x128xi32>
    %10 = arith.sitofp %9 : vector<8x8x128xi32> to vector<8x8x128xf32>
    %11 = vector.shape_cast %10 : vector<8x8x128xf32> to vector<64x128xf32>
    %c0_2 = arith.constant 0 : index
    %c0_3 = arith.constant 0 : index
    %12 = vector.load %arg3[%c0_2, %c0_3] : memref<128x32xf32, #tpu.memory_space<vmem>>, vector<128x32xf32>
    %cst = arith.constant dense<0.000000e+00> : vector<64x32xf32>
    %13 = tpu.matmul %11, %12, %cst {dimension_numbers = #tpu.dot_dimension_numbers<[1], [0], [0], [1], [0, 0, 1, 1], [], []>} : vector<64x128xf32>, vector<128x32xf32>, vector<64x32xf32> -> vector<64x32xf32>
    %c0_4 = arith.constant 0 : index
    %c0_5 = arith.constant 0 : index
    %14 = vector.load %arg4[%c0_4, %c0_5] : memref<1x32xf32, #tpu.memory_space<vmem>>, vector<1x32xf32>
    %15 = vector.broadcast %14 : vector<1x32xf32> to vector<64x32xf32>
    %16 = arith.addf %13, %15 : vector<64x32xf32>
    %cst_6 = arith.constant 0.000000e+00 : f32
    %17 = vector.broadcast %cst_6 : f32 to vector<64x32xf32>
    %18 = arith.minimumf %16, %17 : vector<64x32xf32>
    %19 = math.exp %18 : vector<64x32xf32>
    %cst_7 = arith.constant 0.000000e+00 : f32
    %20 = vector.broadcast %cst_7 : f32 to vector<64x32xf32>
    %21 = arith.maximumf %16, %20 : vector<64x32xf32>
    %22 = arith.addf %19, %21 : vector<64x32xf32>
    %23 = vector.shape_cast %22 : vector<64x32xf32> to vector<8x8x32xf32>
    %24 = tpu.iota {dimensions = array<i32: 1>} : vector<8x128xi32>
    %c0_8 = arith.constant 0 : index
    %c0_9 = arith.constant 0 : index
    %25 = vector.load %arg2[%c0_8, %c0_9] : memref<8x1xi32, #tpu.memory_space<vmem>>, vector<8x1xi32>
    %26 = vector.broadcast %25 : vector<8x1xi32> to vector<8x128xi32>
    %27 = arith.cmpi eq, %24, %26 : vector<8x128xi32>
    %28 = arith.extui %27 : vector<8x128xi1> to vector<8x128xi32>
    %29 = arith.sitofp %28 : vector<8x128xi32> to vector<8x128xf32>
    %c0_10 = arith.constant 0 : index
    %c0_11 = arith.constant 0 : index
    %30 = vector.load %arg5[%c0_10, %c0_11] : memref<128x32xf32, #tpu.memory_space<vmem>>, vector<128x32xf32>
    %cst_12 = arith.constant dense<0.000000e+00> : vector<8x32xf32>
    %31 = tpu.matmul %29, %30, %cst_12 {dimension_numbers = #tpu.dot_dimension_numbers<[1], [0], [0], [1], [0, 0, 1, 1], [], []>} : vector<8x128xf32>, vector<128x32xf32>, vector<8x32xf32> -> vector<8x32xf32>
    %32 = vector.shape_cast %31 : vector<8x32xf32> to vector<8x1x32xf32>
    %33 = vector.broadcast %32 : vector<8x1x32xf32> to vector<8x8x32xf32>
    %34 = arith.mulf %23, %33 : vector<8x8x32xf32>
    %cst_13 = arith.constant dense<0.000000e+00> : vector<8x8xf32>
    %35 = vector.multi_reduction <add>, %34, %cst_13 [2] : vector<8x8x32xf32> to vector<8x8xf32>
    %36 = vector.shape_cast %35 : vector<8x8xf32> to vector<8x8x1xf32>
    %37 = vector.broadcast %36 : vector<8x8x1xf32> to vector<8x8x128xf32>
    %38 = arith.mulf %10, %37 : vector<8x8x128xf32>
    %cst_14 = arith.constant dense<0.000000e+00> : vector<8x128xf32>
    %39 = vector.multi_reduction <add>, %38, %cst_14 [1] : vector<8x8x128xf32> to vector<8x128xf32>
    %cst_15 = arith.constant dense<0.000000e+00> : vector<8xf32>
    %40 = vector.multi_reduction <add>, %39, %cst_15 [1] : vector<8x128xf32> to vector<8xf32>
    %41 = vector.shape_cast %40 : vector<8xf32> to vector<8x1xf32>
    %cst_16 = arith.constant 5.000000e-01 : f32
    %42 = vector.broadcast %cst_16 : f32 to vector<8x1xf32>
    %43 = arith.mulf %42, %41 : vector<8x1xf32>
    %cst_17 = arith.constant 9.99999997E-7 : f32
    %44 = vector.broadcast %cst_17 : f32 to vector<8x1xf32>
    %45 = arith.addf %43, %44 : vector<8x1xf32>
    %46 = tpu.reciprocal %45 {approx = true} : vector<8x1xf32> -> vector<8x1xf32>
    %47 = arith.mulf %45, %46 : vector<8x1xf32>
    %cst_18 = arith.constant 2.000000e+00 : f32
    %48 = vector.broadcast %cst_18 : f32 to vector<8x1xf32>
    %49 = arith.subf %48, %47 : vector<8x1xf32>
    %50 = arith.mulf %46, %49 : vector<8x1xf32>
    %51 = vector.broadcast %50 : vector<8x1xf32> to vector<8x128xf32>
    %52 = arith.mulf %39, %51 : vector<8x128xf32>
    %c0_19 = arith.constant 0 : index
    %c0_20 = arith.constant 0 : index
    %53 = vector.load %arg6[%c0_19, %c0_20] : memref<8x128xf32, #tpu.memory_space<vmem>>, vector<8x128xf32>
    tpu.vector_store %arg6[%c0_19, %c0_20], %52 {strides = array<i32>} : memref<8x128xf32, #tpu.memory_space<vmem>>, vector<8x128xf32>,
    return
  }
  func.func @transform_0(%arg0: i32) -> (i32, i32, i32) {
    %c0_i32 = arith.constant 0 : i32
    %c0_i32_0 = arith.constant 0 : i32
    %c0_i32_1 = arith.constant 0 : i32
    return %arg0, %c0_i32, %c0_i32_0 : i32, i32, i32
  }
  func.func @transform_1(%arg0: i32) -> (i32, i32) {
    %c0_i32 = arith.constant 0 : i32
    %c0_i32_0 = arith.constant 0 : i32
    return %arg0, %c0_i32 : i32, i32
  }
  func.func @transform_2(%arg0: i32) -> (i32, i32) {
    %c0_i32 = arith.constant 0 : i32
    %c0_i32_0 = arith.constant 0 : i32
    %c0_i32_1 = arith.constant 0 : i32
    return %c0_i32, %c0_i32_0 : i32, i32
  }
  func.func @transform_3(%arg0: i32) -> (i32, i32) {
    %c0_i32 = arith.constant 0 : i32
    %c0_i32_0 = arith.constant 0 : i32
    %c0_i32_1 = arith.constant 0 : i32
    return %c0_i32, %c0_i32_0 : i32, i32
  }
  func.func @transform_4(%arg0: i32) -> (i32, i32) {
    %c0_i32 = arith.constant 0 : i32
    %c0_i32_0 = arith.constant 0 : i32
    %c0_i32_1 = arith.constant 0 : i32
    return %c0_i32, %c0_i32_0 : i32, i32
  }
  func.func @transform_5(%arg0: i32) -> (i32, i32) {
    %c0_i32 = arith.constant 0 : i32
    %c0_i32_0 = arith.constant 0 : i32
    return %arg0, %c0_i32 : i32, i32
  }
}

</mosaic_0001>

<llo_original>
// kernel: tpu_custom_call.1
$region0: #{tpu_custom_call.1}
  #allocation0 [shape = 'u32[]', space=smem, size = 0x4, offset = 0x4, fixed_abs, tag = 'smem constant byte address 0x4 - core index']
  #allocation1 [shape = 'u32[144,128]{1,0:T(1,128)}', space=vmem, size = 0x12000, scoped, tag = 'internal scratch']
  %s0 = inlined_call_operand.vmem [shape: s32[8,8,2], index: 0, kind: input, shape index: {}]
  %s1 = inlined_call_operand.vmem [shape: s32[8,1], index: 1, kind: input, shape index: {}]
  %s2 = inlined_call_operand.vmem [shape: f32[128,32], index: 2, kind: input, shape index: {}]
  %s3 = inlined_call_operand.vmem [shape: f32[1,32], index: 3, kind: input, shape index: {}]
  %s4 = inlined_call_operand.vmem [shape: f32[128,32], index: 4, kind: input, shape index: {}]
  %s5 = inlined_call_operand.hbm [shape: f32[8,128], index: 5, kind: output, shape index: {}]
  %s6 = sld [smem:[#allocation0]]
  $region30: #{tpu_custom_call.1} parent=0
    _
  %s8 = ssub.s32 1, %s6
  %s9 = scalar_select 0, %s8, %s6
  $region1: #{tpu_custom_call.1} parent=0
    #allocation2 [shape = 'u8[4096]{0}', space=vmem, size = 0x1000, scoped, tag = 'output window, operand 0, single buffered']
    #allocation3 [shape = 's32[1]{0}', space=sflag, size = 0x4, scoped, tag = 'scoped memory for tpu_custom_call.1']
    %10 = vsyncpa [#allocation3], 0
    // Predicated region
    $region2: #{tpu_custom_call.1} parent=1 // pred_check
      _
    $region3: #{tpu_custom_call.1} parent=1 // pred_check_branch
      %12 = sbr.rel (0) target = $region5
    $region4: #{tpu_custom_call.1} parent=1 // pred_region
      _
    $region5: #{tpu_custom_call.1} parent=1 // pred_fallthru
      _
    // Predicated region
    $region6: #{tpu_custom_call.1} parent=1 // pred_check
      _
    $region7: #{tpu_custom_call.1} parent=1 // pred_check_branch
      %14 = sbr.rel (0) target = $region9
    $region8: #{tpu_custom_call.1} parent=1 // pred_region
      _
    $region9: #{tpu_custom_call.1} parent=1 // pred_fallthru
      _
    // Predicated region
    $region10: #{tpu_custom_call.1} parent=1 // pred_check
      _
    $region11: #{tpu_custom_call.1} parent=1 // pred_check_branch
      %16 = sbr.rel (0) target = $region13
    $region12: #{tpu_custom_call.1} parent=1 // pred_region
      _
    $region13: #{tpu_custom_call.1} parent=1 // pred_fallthru
      _
    // Predicated region
    $region14: #{tpu_custom_call.1} parent=1 // pred_check
      _
    $region15: #{tpu_custom_call.1} parent=1 // pred_check_branch
      %18 = sbr.rel (0) target = $region17
    $region16: #{tpu_custom_call.1} parent=1 // pred_region
      _
    $region17: #{tpu_custom_call.1} parent=1 // pred_fallthru
      _
    // Predicated region
    $region18: #{tpu_custom_call.1} parent=1 // pred_check
      _
    $region19: #{tpu_custom_call.1} parent=1 // pred_check_branch
      %20 = sbr.rel (0) target = $region21
    $region20: #{tpu_custom_call.1} parent=1 // pred_region
      _
    $region21: #{tpu_custom_call.1} parent=1 // pred_fallthru
      _
    %v21 = vld [vmem:[%s0] sm:$0xff]
    %v22 = vld [vmem:[%s0 + $0x8] sm:$0xff]
    %v23 = vld [vmem:[%s0 + $0x10] sm:$0xff]
    %v24 = vld [vmem:[%s0 + $0x18] sm:$0xff]
    %v25 = vld [vmem:[%s0 + $0x20] sm:$0xff]
    %v26 = vld [vmem:[%s0 + $0x28] sm:$0xff]
    %v27 = vld [vmem:[%s0 + $0x30] sm:$0xff]
    %v28 = vld [vmem:[%s0 + $0x38] sm:$0xff]
    %v29 = vlaneseq
    %v30 = vand.u32 %v29, 127
    %31 = vset.pattern.permute.xlu0 0
    %32 = vperm.xlu0 %31, %v21
    %v33 = vpop.permute.xlu0 %32
    %34 = vset.pattern.permute.xlu0 0
    %35 = vperm.xlu0 %34, %v22
    %v36 = vpop.permute.xlu0 %35
    %37 = vset.pattern.permute.xlu0 0
    %38 = vperm.xlu0 %37, %v23
    %v39 = vpop.permute.xlu0 %38
    %40 = vset.pattern.permute.xlu0 0
    %41 = vperm.xlu0 %40, %v24
    %v42 = vpop.permute.xlu0 %41
    %43 = vset.pattern.permute.xlu0 0
    %44 = vperm.xlu0 %43, %v25
    %v45 = vpop.permute.xlu0 %44
    %46 = vset.pattern.permute.xlu0 0
    %47 = vperm.xlu0 %46, %v26
    %v48 = vpop.permute.xlu0 %47
    %49 = vset.pattern.permute.xlu0 0
    %50 = vperm.xlu0 %49, %v27
    %v51 = vpop.permute.xlu0 %50
    %52 = vset.pattern.permute.xlu0 0
    %53 = vperm.xlu0 %52, %v28
    %v54 = vpop.permute.xlu0 %53
    %vm55 = vcmp.eq.s32.totalorder %v30, %v33
    %vm56 = vcmp.eq.s32.totalorder %v30, %v36
    %vm57 = vcmp.eq.s32.totalorder %v30, %v39
    %vm58 = vcmp.eq.s32.totalorder %v30, %v42
    %vm59 = vcmp.eq.s32.totalorder %v30, %v45
    %vm60 = vcmp.eq.s32.totalorder %v30, %v48
    %vm61 = vcmp.eq.s32.totalorder %v30, %v51
    %vm62 = vcmp.eq.s32.totalorder %v30, %v54
    %63 = vset.pattern.permute.xlu0 1
    %64 = vperm.xlu0 %63, %v21
    %v65 = vpop.permute.xlu0 %64
    %66 = vset.pattern.permute.xlu0 1
    %67 = vperm.xlu0 %66, %v22
    %v68 = vpop.permute.xlu0 %67
    %69 = vset.pattern.permute.xlu0 1
    %70 = vperm.xlu0 %69, %v23
    %v71 = vpop.permute.xlu0 %70
    %72 = vset.pattern.permute.xlu0 1
    %73 = vperm.xlu0 %72, %v24
    %v74 = vpop.permute.xlu0 %73
    %75 = vset.pattern.permute.xlu0 1
    %76 = vperm.xlu0 %75, %v25
    %v77 = vpop.permute.xlu0 %76
    %78 = vset.pattern.permute.xlu0 1
    %79 = vperm.xlu0 %78, %v26
    %v80 = vpop.permute.xlu0 %79
    %81 = vset.pattern.permute.xlu0 1
    %82 = vperm.xlu0 %81, %v27
    %v83 = vpop.permute.xlu0 %82
    %84 = vset.pattern.permute.xlu0 1
    %85 = vperm.xlu0 %84, %v28
    %v86 = vpop.permute.xlu0 %85
    %vm87 = vcmp.eq.s32.totalorder %v30, %v65
    %vm88 = vcmp.eq.s32.totalorder %v30, %v68
    %vm89 = vcmp.eq.s32.totalorder %v30, %v71
    %vm90 = vcmp.eq.s32.totalorder %v30, %v74
    %vm91 = vcmp.eq.s32.totalorder %v30, %v77
    %vm92 = vcmp.eq.s32.totalorder %v30, %v80
    %vm93 = vcmp.eq.s32.totalorder %v30, %v83
    %vm94 = vcmp.eq.s32.totalorder %v30, %v86
    %vm95 = vmor %vm55, %vm87
    %vm96 = vmor %vm56, %vm88
    %vm97 = vmor %vm57, %vm89
    %vm98 = vmor %vm58, %vm90
    %vm99 = vmor %vm59, %vm91
    %vm100 = vmor %vm60, %vm92
    %vm101 = vmor %vm61, %vm93
    %vm102 = vmor %vm62, %vm94
    %v103 = vsel %vm95, 1, 0
    %v104 = vsel %vm96, 1, 0
    %v105 = vsel %vm97, 1, 0
    %v106 = vsel %vm98, 1, 0
    %v107 = vsel %vm99, 1, 0
    %v108 = vsel %vm100, 1, 0
    %v109 = vsel %vm101, 1, 0
    %v110 = vsel %vm102, 1, 0
    %v111 = vcvt.s32.f32 %v103
    %v112 = vcvt.s32.f32 %v104
    %v113 = vcvt.s32.f32 %v105
    %v114 = vcvt.s32.f32 %v106
    %v115 = vcvt.s32.f32 %v107
    %v116 = vcvt.s32.f32 %v108
    %v117 = vcvt.s32.f32 %v109
    %v118 = vcvt.s32.f32 %v110
    %v119 = vld [vmem:[%s2] sm:$0xff]
    %v120 = vld [vmem:[%s2 + $0x8] sm:$0xff]
    %v121 = vld [vmem:[%s2 + $0x10] sm:$0xff]
    %v122 = vld [vmem:[%s2 + $0x18] sm:$0xff]
    %v123 = vld [vmem:[%s2 + $0x20] sm:$0xff]
    %v124 = vld [vmem:[%s2 + $0x28] sm:$0xff]
    %v125 = vld [vmem:[%s2 + $0x30] sm:$0xff]
    %v126 = vld [vmem:[%s2 + $0x38] sm:$0xff]
    %v127 = vld [vmem:[%s2 + $0x40] sm:$0xff]
    %v128 = vld [vmem:[%s2 + $0x48] sm:$0xff]
    %v129 = vld [vmem:[%s2 + $0x50] sm:$0xff]
    %v130 = vld [vmem:[%s2 + $0x58] sm:$0xff]
    %v131 = vld [vmem:[%s2 + $0x60] sm:$0xff]
    %v132 = vld [vmem:[%s2 + $0x68] sm:$0xff]
    %v133 = vld [vmem:[%s2 + $0x70] sm:$0xff]
    %v134 = vld [vmem:[%s2 + $0x78] sm:$0xff]
    %v135 = vld [vmem:[%s3] sm:$0x1]
    %v137 = vlaneseq
    %v138 = vshrl.u32 %v137, 7
    %v139 = vsub.s32 0, %v138
    %v140 = vrot.slane %v135, %v139
    %142 = vmatprep.subr.mxu0 0.0
    %143 = vmatpush1.msra.mxu0 %v119
    %144 = vmatprep.subr.mxu0 0.0
    %145 = vmatpush1.msra.mxu0 %v120
    %146 = vmatprep.subr.mxu0 0.0
    %147 = vmatpush1.msra.mxu0 %v121
    %148 = vmatprep.subr.mxu0 0.0
    %149 = vmatpush1.msra.mxu0 %v122
    %150 = vmatprep.subr.mxu0 0.0
    %151 = vmatpush1.msra.mxu0 %v123
    %152 = vmatprep.subr.mxu0 0.0
    %153 = vmatpush1.msra.mxu0 %v124
    %154 = vmatprep.subr.mxu0 0.0
    %155 = vmatpush1.msra.mxu0 %v125
    %156 = vmatprep.subr.mxu0 0.0
    %157 = vmatpush1.msra.mxu0 %v126
    %158 = vmatprep.subr.mxu0 0.0
    %159 = vmatpush1.msra.mxu0 %v127
    %160 = vmatprep.subr.mxu0 0.0
    %161 = vmatpush1.msra.mxu0 %v128
    %162 = vmatprep.subr.mxu0 0.0
    %163 = vmatpush1.msra.mxu0 %v129
    %164 = vmatprep.subr.mxu0 0.0
    %165 = vmatpush1.msra.mxu0 %v130
    %166 = vmatprep.subr.mxu0 0.0
    %167 = vmatpush1.msra.mxu0 %v131
    %168 = vmatprep.subr.mxu0 0.0
    %169 = vmatpush1.msra.mxu0 %v132
    %170 = vmatprep.subr.mxu0 0.0
    %171 = vmatpush1.msra.mxu0 %v133
    %172 = vmatprep.subr.mxu0 0.0
    %173 = vmatpush1.msra.mxu0 %v134
    %174 = vmatprep.subr.mxu0 0.0
    %175 = vmatpush1.msra.mxu0 0.0
    %176 = vmatprep.subr.mxu0 0.0
    %177 = vmatpush1.msra.mxu0 0.0
    %178 = vmatprep.subr.mxu0 0.0
    %179 = vmatpush1.msra.mxu0 0.0
    %180 = vmatprep.subr.mxu0 0.0
    %181 = vmatpush1.msra.mxu0 0.0
    %182 = vmatprep.subr.mxu0 0.0
    %183 = vmatpush1.msra.mxu0 0.0
    %184 = vmatprep.subr.mxu0 0.0
    %185 = vmatpush1.msra.mxu0 0.0
    %186 = vmatprep.subr.mxu0 0.0
    %187 = vmatpush1.msra.mxu0 0.0
    %188 = vmatprep.subr.mxu0 0.0
    %189 = vmatpush1.msra.mxu0 0.0
    %190 = vmatprep.subr.mxu0 0.0
    %191 = vmatpush1.msra.mxu0 0.0
    %192 = vmatprep.subr.mxu0 0.0
    %193 = vmatpush1.msra.mxu0 0.0
    %194 = vmatprep.subr.mxu0 0.0
    %195 = vmatpush1.msra.mxu0 0.0
    %196 = vmatprep.subr.mxu0 0.0
    %197 = vmatpush1.msra.mxu0 0.0
    %198 = vmatprep.subr.mxu0 0.0
    %199 = vmatpush1.msra.mxu0 0.0
    %200 = vmatprep.subr.mxu0 0.0
    %201 = vmatpush1.msra.mxu0 0.0
    %202 = vmatprep.subr.mxu0 0.0
    %203 = vmatpush1.msra.mxu0 0.0
    %204 = vmatprep.subr.mxu0 0.0
    %205 = vmatpush1.msra.mxu0 0.0
    %206 = vmatprep.mubr.f32.mxu0 0.0
    %207 = vmatmul.mubr.f32.gmra.mrb[0].mxu0 %v111
    %v208 = vpop.f32.mrb[0].mxu0
    %v209 = vadd.f32 %v140, %v208
    %v210 = vpop.f32.mrb[0].mxu0
    %211 = vmatprep.mubr.f32.mxu0 0.0
    %212 = vmatmul.mubr.f32.gmra.mrb[0].mxu0 %v112
    %v213 = vpop.f32.mrb[0].mxu0
    %v214 = vadd.f32 %v140, %v213
    %v215 = vpop.f32.mrb[0].mxu0
    %216 = vmatprep.mubr.f32.mxu0 0.0
    %217 = vmatmul.mubr.f32.gmra.mrb[0].mxu0 %v113
    %v218 = vpop.f32.mrb[0].mxu0
    %v219 = vadd.f32 %v140, %v218
    %v220 = vpop.f32.mrb[0].mxu0
    %221 = vmatprep.mubr.f32.mxu0 0.0
    %222 = vmatmul.mubr.f32.gmra.mrb[0].mxu0 %v114
    %v223 = vpop.f32.mrb[0].mxu0
    %v224 = vadd.f32 %v140, %v223
    %v225 = vpop.f32.mrb[0].mxu0
    %226 = vmatprep.mubr.f32.mxu0 0.0
    %227 = vmatmul.mubr.f32.gmra.mrb[0].mxu0 %v115
    %v228 = vpop.f32.mrb[0].mxu0
    %v229 = vadd.f32 %v140, %v228
    %v230 = vpop.f32.mrb[0].mxu0
    %231 = vmatprep.mubr.f32.mxu0 0.0
    %232 = vmatmul.mubr.f32.gmra.mrb[0].mxu0 %v116
    %v233 = vpop.f32.mrb[0].mxu0
    %v234 = vadd.f32 %v140, %v233
    %v235 = vpop.f32.mrb[0].mxu0
    %236 = vmatprep.mubr.f32.mxu0 0.0
    %237 = vmatmul.mubr.f32.gmra.mrb[0].mxu0 %v117
    %v238 = vpop.f32.mrb[0].mxu0
    %v239 = vadd.f32 %v140, %v238
    %v240 = vpop.f32.mrb[0].mxu0
    %241 = vmatprep.mubr.f32.mxu0 0.0
    %242 = vmatmul.mubr.f32.gmra.mrb[0].mxu0 %v118
    %v243 = vpop.f32.mrb[0].mxu0
    %v244 = vadd.f32 %v140, %v243
    %v245 = vpop.f32.mrb[0].mxu0
    %246 = vdwg.mxu0
    %v247 = vmin.f32 %v209, 0.0
    %v248 = vmin.f32 %v214, 0.0
    %v249 = vmin.f32 %v219, 0.0
    %v250 = vmin.f32 %v224, 0.0
    %v251 = vmin.f32 %v229, 0.0
    %v252 = vmin.f32 %v234, 0.0
    %v253 = vmin.f32 %v239, 0.0
    %v254 = vmin.f32 %v244, 0.0
    %v255 = vmul.f32 %v247, 1.442695
    %v256 = vpow.pop %v255
    %v257 = vmul.f32 %v248, 1.442695
    %v258 = vpow.pop %v257
    %v259 = vmul.f32 %v249, 1.442695
    %v260 = vpow.pop %v259
    %v261 = vmul.f32 %v250, 1.442695
    %v262 = vpow.pop %v261
    %v263 = vmul.f32 %v251, 1.442695
    %v264 = vpow.pop %v263
    %v265 = vmul.f32 %v252, 1.442695
    %v266 = vpow.pop %v265
    %v267 = vmul.f32 %v253, 1.442695
    %v268 = vpow.pop %v267
    %v269 = vmul.f32 %v254, 1.442695
    %v270 = vpow.pop %v269
    %v271 = vmax.f32 %v209, 0.0
    %v272 = vmax.f32 %v214, 0.0
    %v273 = vmax.f32 %v219, 0.0
    %v274 = vmax.f32 %v224, 0.0
    %v275 = vmax.f32 %v229, 0.0
    %v276 = vmax.f32 %v234, 0.0
    %v277 = vmax.f32 %v239, 0.0
    %v278 = vmax.f32 %v244, 0.0
    %v279 = vadd.f32 %v256, %v271
    %v280 = vadd.f32 %v258, %v272
    %v281 = vadd.f32 %v260, %v273
    %v282 = vadd.f32 %v262, %v274
    %v283 = vadd.f32 %v264, %v275
    %v284 = vadd.f32 %v266, %v276
    %v285 = vadd.f32 %v268, %v277
    %v286 = vadd.f32 %v270, %v278
    %v287 = vld [vmem:[%s1] sm:$0xff]
    %288 = vset.pattern.permute.xlu0 0
    %289 = vperm.xlu0 %288, %v287
    %v290 = vpop.permute.xlu0 %289
    %vm291 = vcmp.eq.s32.totalorder %v30, %v290
    %v292 = vsel %vm291, 1, 0
    %v293 = vcvt.s32.f32 %v292
    %v294 = vld [vmem:[%s4] sm:$0xff]
    %v295 = vld [vmem:[%s4 + $0x8] sm:$0xff]
    %v296 = vld [vmem:[%s4 + $0x10] sm:$0xff]
    %v297 = vld [vmem:[%s4 + $0x18] sm:$0xff]
    %v298 = vld [vmem:[%s4 + $0x20] sm:$0xff]
    %v299 = vld [vmem:[%s4 + $0x28] sm:$0xff]
    %v300 = vld [vmem:[%s4 + $0x30] sm:$0xff]
    %v301 = vld [vmem:[%s4 + $0x38] sm:$0xff]
    %v302 = vld [vmem:[%s4 + $0x40] sm:$0xff]
    %v303 = vld [vmem:[%s4 + $0x48] sm:$0xff]
    %v304 = vld [vmem:[%s4 + $0x50] sm:$0xff]
    %v305 = vld [vmem:[%s4 + $0x58] sm:$0xff]
    %v306 = vld [vmem:[%s4 + $0x60] sm:$0xff]
    %v307 = vld [vmem:[%s4 + $0x68] sm:$0xff]
    %v308 = vld [vmem:[%s4 + $0x70] sm:$0xff]
    %v309 = vld [vmem:[%s4 + $0x78] sm:$0xff]
    %310 = vmatprep.subr.mxu0 0.0
    %311 = vmatpush1.msra.mxu0 %v294
    %312 = vmatprep.subr.mxu0 0.0
    %313 = vmatpush1.msra.mxu0 %v295
    %314 = vmatprep.subr.mxu0 0.0
    %315 = vmatpush1.msra.mxu0 %v296
    %316 = vmatprep.subr.mxu0 0.0
    %317 = vmatpush1.msra.mxu0 %v297
    %318 = vmatprep.subr.mxu0 0.0
    %319 = vmatpush1.msra.mxu0 %v298
    %320 = vmatprep.subr.mxu0 0.0
    %321 = vmatpush1.msra.mxu0 %v299
    %322 = vmatprep.subr.mxu0 0.0
    %323 = vmatpush1.msra.mxu0 %v300
    %324 = vmatprep.subr.mxu0 0.0
    %325 = vmatpush1.msra.mxu0 %v301
    %326 = vmatprep.subr.mxu0 0.0
    %327 = vmatpush1.msra.mxu0 %v302
    %328 = vmatprep.subr.mxu0 0.0
    %329 = vmatpush1.msra.mxu0 %v303
    %330 = vmatprep.subr.mxu0 0.0
    %331 = vmatpush1.msra.mxu0 %v304
    %332 = vmatprep.subr.mxu0 0.0
    %333 = vmatpush1.msra.mxu0 %v305
    %334 = vmatprep.subr.mxu0 0.0
    %335 = vmatpush1.msra.mxu0 %v306
    %336 = vmatprep.subr.mxu0 0.0
    %337 = vmatpush1.msra.mxu0 %v307
    %338 = vmatprep.subr.mxu0 0.0
    %339 = vmatpush1.msra.mxu0 %v308
    %340 = vmatprep.subr.mxu0 0.0
    %341 = vmatpush1.msra.mxu0 %v309
    %342 = vmatprep.subr.mxu0 0.0
    %343 = vmatpush1.msra.mxu0 0.0
    %344 = vmatprep.subr.mxu0 0.0
    %345 = vmatpush1.msra.mxu0 0.0
    %346 = vmatprep.subr.mxu0 0.0
    %347 = vmatpush1.msra.mxu0 0.0
    %348 = vmatprep.subr.mxu0 0.0
    %349 = vmatpush1.msra.mxu0 0.0
    %350 = vmatprep.subr.mxu0 0.0
    %351 = vmatpush1.msra.mxu0 0.0
    %352 = vmatprep.subr.mxu0 0.0
    %353 = vmatpush1.msra.mxu0 0.0
    %354 = vmatprep.subr.mxu0 0.0
    %355 = vmatpush1.msra.mxu0 0.0
    %356 = vmatprep.subr.mxu0 0.0
    %357 = vmatpush1.msra.mxu0 0.0
    %358 = vmatprep.subr.mxu0 0.0
    %359 = vmatpush1.msra.mxu0 0.0
    %360 = vmatprep.subr.mxu0 0.0
    %361 = vmatpush1.msra.mxu0 0.0
    %362 = vmatprep.subr.mxu0 0.0
    %363 = vmatpush1.msra.mxu0 0.0
    %364 = vmatprep.subr.mxu0 0.0
    %365 = vmatpush1.msra.mxu0 0.0
    %366 = vmatprep.subr.mxu0 0.0
    %367 = vmatpush1.msra.mxu0 0.0
    %368 = vmatprep.subr.mxu0 0.0
    %369 = vmatpush1.msra.mxu0 0.0
    %370 = vmatprep.subr.mxu0 0.0
    %371 = vmatpush1.msra.mxu0 0.0
    %372 = vmatprep.subr.mxu0 0.0
    %373 = vmatpush1.msra.mxu0 0.0
    %374 = vmatprep.mubr.f32.mxu0 0.0
    %375 = vmatmul.mubr.f32.gmra.mrb[0].mxu0 %v293
    %v376 = vpop.f32.mrb[0].mxu0
    %v377 = vadd.f32 0.0, %v376
    %v378 = vpop.f32.mrb[0].mxu0
    %379 = vdwg.mxu0
    %v381 = vcombine.high %v377, %v377
    %v383 = vunpack.c.l.s4 1966171168
    %v384 = vunpack.c.0.s8 %v383
    %v385 = vlaneseq
    %v386 = vshrl.u32 %v385, 7
    %v387 = vsub.s32 %v384, %v386
    %v388 = vrot.slane %v377, %v387
    %v390 = vunpack.c.l.s4 1966171168
    %v391 = vunpack.c.0.s8 %v390
    %v392 = vlaneseq
    %v393 = vshrl.u32 %v392, 7
    %v394 = vsub.s32 %v391, %v393
    %v395 = vrot.slane %v381, %v394
    %v396 = vcombine.high %v388, %v388
    %v397 = vcombine.high %v395, %v395
    %v399 = vunpack.c.l.s4 1966171168
    %v400 = vunpack.c.0.s8 %v399
    %v401 = vlaneseq
    %v402 = vshrl.u32 %v401, 7
    %v403 = vsub.s32 %v400, %v402
    %v404 = vrot.slane %v388, %v403
    %v406 = vunpack.c.l.s4 1966171168
    %v407 = vunpack.c.0.s8 %v406
    %v408 = vlaneseq
    %v409 = vshrl.u32 %v408, 7
    %v410 = vsub.s32 %v407, %v409
    %v411 = vrot.slane %v395, %v410
    %v413 = vunpack.c.l.s4 1966171168
    %v414 = vunpack.c.0.s8 %v413
    %v415 = vlaneseq
    %v416 = vshrl.u32 %v415, 7
    %v417 = vsub.s32 %v414, %v416
    %v418 = vrot.slane %v396, %v417
    %v420 = vunpack.c.l.s4 1966171168
    %v421 = vunpack.c.0.s8 %v420
    %v422 = vlaneseq
    %v423 = vshrl.u32 %v422, 7
    %v424 = vsub.s32 %v421, %v423
    %v425 = vrot.slane %v397, %v424
    %v426 = vcombine.high %v404, %v404
    %v427 = vcombine.high %v411, %v411
    %v428 = vcombine.high %v418, %v418
    %v429 = vcombine.high %v425, %v425
    %v430 = vlaneseq
    %v431 = vshrl.u32 %v430, 7
    %v432 = vsub.s32 0, %v431
    %v433 = vrot.slane %v404, %v432
    %v434 = vlaneseq
    %v435 = vshrl.u32 %v434, 7
    %v436 = vsub.s32 0, %v435
    %v437 = vrot.slane %v418, %v436
    %v438 = vlaneseq
    %v439 = vshrl.u32 %v438, 7
    %v440 = vsub.s32 0, %v439
    %v441 = vrot.slane %v426, %v440
    %v442 = vlaneseq
    %v443 = vshrl.u32 %v442, 7
    %v444 = vsub.s32 0, %v443
    %v445 = vrot.slane %v428, %v444
    %v446 = vlaneseq
    %v447 = vshrl.u32 %v446, 7
    %v448 = vsub.s32 0, %v447
    %v449 = vrot.slane %v411, %v448
    %v450 = vlaneseq
    %v451 = vshrl.u32 %v450, 7
    %v452 = vsub.s32 0, %v451
    %v453 = vrot.slane %v425, %v452
    %v454 = vlaneseq
    %v455 = vshrl.u32 %v454, 7
    %v456 = vsub.s32 0, %v455
    %v457 = vrot.slane %v427, %v456
    %v458 = vlaneseq
    %v459 = vshrl.u32 %v458, 7
    %v460 = vsub.s32 0, %v459
    %v461 = vrot.slane %v429, %v460
    %v470 = vmul.f32 %v279, %v433
    %v471 = vmul.f32 %v280, %v437
    %v472 = vmul.f32 %v281, %v441
    %v473 = vmul.f32 %v282, %v445
    %v474 = vmul.f32 %v283, %v449
    %v475 = vmul.f32 %v284, %v453
    %v476 = vmul.f32 %v285, %v457
    %v477 = vmul.f32 %v286, %v461
    %vm478 = vcmask 261120
    %v479 = vsel %vm478, %v470, 0.0
    %480 = vadd.xlane.f32.xlu0 %v479
    %v481 = vpop.xlane.xlu0 %480
    %v482 = vsel %vm478, %v471, 0.0
    %483 = vadd.xlane.f32.xlu0 %v482
    %v484 = vpop.xlane.xlu0 %483
    %v485 = vsel %vm478, %v472, 0.0
    %486 = vadd.xlane.f32.xlu0 %v485
    %v487 = vpop.xlane.xlu0 %486
    %v488 = vsel %vm478, %v473, 0.0
    %489 = vadd.xlane.f32.xlu0 %v488
    %v490 = vpop.xlane.xlu0 %489
    %v491 = vsel %vm478, %v474, 0.0
    %492 = vadd.xlane.f32.xlu0 %v491
    %v493 = vpop.xlane.xlu0 %492
    %v494 = vsel %vm478, %v475, 0.0
    %495 = vadd.xlane.f32.xlu0 %v494
    %v496 = vpop.xlane.xlu0 %495
    %v497 = vsel %vm478, %v476, 0.0
    %498 = vadd.xlane.f32.xlu0 %v497
    %v499 = vpop.xlane.xlu0 %498
    %v500 = vsel %vm478, %v477, 0.0
    %501 = vadd.xlane.f32.xlu0 %v500
    %v502 = vpop.xlane.xlu0 %501
    %v503 = vmul.f32 %v111, %v481
    %v504 = vmul.f32 %v112, %v484
    %v505 = vmul.f32 %v113, %v487
    %v506 = vmul.f32 %v114, %v490
    %v507 = vmul.f32 %v115, %v493
    %v508 = vmul.f32 %v116, %v496
    %v509 = vmul.f32 %v117, %v499
    %v510 = vmul.f32 %v118, %v502
    %v511 = vrot.slane %v503, 4
    %v512 = vadd.f32 %v503, %v511
    %v513 = vrot.slane %v512, 2
    %v514 = vadd.f32 %v512, %v513
    %v515 = vrot.slane %v514, 1
    %v516 = vadd.f32 %v514, %v515
    %v517 = vrot.slane %v504, 4
    %v518 = vadd.f32 %v504, %v517
    %v519 = vrot.slane %v518, 2
    %v520 = vadd.f32 %v518, %v519
    %v521 = vrot.slane %v520, 1
    %v522 = vadd.f32 %v520, %v521
    %v523 = vrot.slane %v505, 4
    %v524 = vadd.f32 %v505, %v523
    %v525 = vrot.slane %v524, 2
    %v526 = vadd.f32 %v524, %v525
    %v527 = vrot.slane %v526, 1
    %v528 = vadd.f32 %v526, %v527
    %v529 = vrot.slane %v506, 4
    %v530 = vadd.f32 %v506, %v529
    %v531 = vrot.slane %v530, 2
    %v532 = vadd.f32 %v530, %v531
    %v533 = vrot.slane %v532, 1
    %v534 = vadd.f32 %v532, %v533
    %v535 = vrot.slane %v507, 4
    %v536 = vadd.f32 %v507, %v535
    %v537 = vrot.slane %v536, 2
    %v538 = vadd.f32 %v536, %v537
    %v539 = vrot.slane %v538, 1
    %v540 = vadd.f32 %v538, %v539
    %v541 = vrot.slane %v508, 4
    %v542 = vadd.f32 %v508, %v541
    %v543 = vrot.slane %v542, 2
    %v544 = vadd.f32 %v542, %v543
    %v545 = vrot.slane %v544, 1
    %v546 = vadd.f32 %v544, %v545
    %v547 = vrot.slane %v509, 4
    %v548 = vadd.f32 %v509, %v547
    %v549 = vrot.slane %v548, 2
    %v550 = vadd.f32 %v548, %v549
    %v551 = vrot.slane %v550, 1
    %v552 = vadd.f32 %v550, %v551
    %v553 = vrot.slane %v510, 4
    %v554 = vadd.f32 %v510, %v553
    %v555 = vrot.slane %v554, 2
    %v556 = vadd.f32 %v554, %v555
    %v557 = vrot.slane %v556, 1
    %v558 = vadd.f32 %v556, %v557
    %vm567 = vcmask 1041409
    %v568 = vsel %vm567, %v522, %v516
    %vm569 = vcmask 1042434
    %v570 = vsel %vm569, %v528, %v568
    %vm571 = vcmask 1043459
    %v572 = vsel %vm571, %v534, %v570
    %vm573 = vcmask 1044484
    %v574 = vsel %vm573, %v540, %v572
    %vm575 = vcmask 1045509
    %v576 = vsel %vm575, %v546, %v574
    %vm577 = vcmask 1046534
    %v578 = vsel %vm577, %v552, %v576
    %vm579 = vcmask 1047559
    %v580 = vsel %vm579, %v558, %v578
    %582 = vadd.xlane.f32.xlu0 %v580
    %v583 = vpop.xlane.xlu0 %582
    %v584 = vmul.f32 %v583, 0.5
    %v585 = vadd.f32 %v584, 1e-06
    %v586 = vrcp.pop %v585
    %v587 = vmul.f32 %v585, %v586
    %v588 = vsub.f32 2.0, %v587
    %v589 = vmul.f32 %v586, %v588
    %v591 = vrot.slane %v589, 1
    %v592 = vrot.slane %v589, 2
    %v593 = vrot.slane %v589, 3
    %v594 = vrot.slane %v589, 4
    %v595 = vrot.slane %v589, 5
    %v596 = vrot.slane %v589, 6
    %v597 = vrot.slane %v589, 7
    %v606 = vmul.f32 %v516, %v589
    %v607 = vmul.f32 %v522, %v591
    %v608 = vmul.f32 %v528, %v592
    %v609 = vmul.f32 %v534, %v593
    %v610 = vmul.f32 %v540, %v594
    %v611 = vmul.f32 %v546, %v595
    %v612 = vmul.f32 %v552, %v596
    %v613 = vmul.f32 %v558, %v597
    %v622 = vrot.slane %v607, 7
    %v623 = vsel %vm567, %v622, %v606
    %v624 = vrot.slane %v608, 6
    %v625 = vsel %vm569, %v624, %v623
    %v626 = vrot.slane %v609, 5
    %v627 = vsel %vm571, %v626, %v625
    %v628 = vrot.slane %v610, 4
    %v629 = vsel %vm573, %v628, %v627
    %v630 = vrot.slane %v611, 3
    %v631 = vsel %vm575, %v630, %v629
    %v632 = vrot.slane %v612, 2
    %v633 = vsel %vm577, %v632, %v631
    %v634 = vrot.slane %v613, 1
    %v635 = vsel %vm579, %v634, %v633
    %637 = vst [vmem:[#allocation2] sm:$0xff] %v635
    // Predicated region
    $region22: #{tpu_custom_call.1} parent=1 // pred_check
      _
    $region23: #{tpu_custom_call.1} parent=1 // pred_check_branch
      %639 = sbr.rel (0) target = $region25
    $region24: #{tpu_custom_call.1} parent=1 // pred_region
      %s641 = ssub.s32 128, 128
      %642 = vsyncadd [#allocation3], %s641
      %s644 = sshll.u32 [#allocation2], 4
      %s645 = int_to_ptr.vmem [resolvable:$true] %s644
      %647 = dma.vmem_to_hbm [thread:$0]  %s645, 128, %s5, [#allocation3]
    $region25: #{tpu_custom_call.1} parent=1 // pred_fallthru
      _
    // Predicated region
    $region26: #{tpu_custom_call.1} parent=1 // pred_check
      _
    $region27: #{tpu_custom_call.1} parent=1 // pred_check_branch
      %649 = sbr.rel (0) target = $region29
    $region28: #{tpu_custom_call.1} parent=1 // pred_region
      %650 = dma.done [#allocation3], 128
    $region29: #{tpu_custom_call.1} parent=1 // pred_fallthru
      _
    %651 = vsyncpa [#allocation3], 1

</llo_original>
